<compile_context>
chip_gen: v7x
topology: tpu7x:2x2x1
jax: 0.10.0
libtpu: 0.0.40
codegen_flags: <defaults>
</compile_context>

<pallas_src>
import functools

import jax
import jax.numpy as jnp
from jax.experimental import pallas as pl
from jax.experimental.pallas import tpu as pltpu


def rnn_kernel(x_ref, win_ref, bin_ref, wblk_ref, wfc_ref, bfc_ref, out_ref,
               *, B, S, H):
    f32, bf16 = jnp.float32, jnp.bfloat16

    # ---- hoisted input projection for ALL waves (one GEMM) ----------------
    # x_ref: ((S+1)*B, D) time-major (row = t*B + b, last B rows are zeros).
    # win_ref: (D, 2H) = [Wih0^T | 0]; bin_ref: (1, 2H) = [b_ih0+b_hh0 | b_ih1+b_hh1]
    # => add_all rows t*B..t*B+B-1 = [ x_t @ Wih0^T + b0 | b1 ]   (right half
    #    is exactly b1 because the padded weight block is zero).
    add_all = (jnp.dot(x_ref[...].astype(bf16), win_ref[...].astype(bf16),
                       preferred_element_type=f32)
               + bin_ref[...])                          # ((S+1)*B, 2H) f32

    # Block-triangular recurrent weight [[Whh0^T, Wih1^T], [0, Whh1^T]]:
    # one MXU tile, loaded/cast once.
    wblk = wblk_ref[...].astype(bf16)                   # (2H, 2H)

    # ---- wave 0 (prologue): h0_0 = tanh(x_0 Wih0^T + b0); h1 half = 0 ------
    lane = jax.lax.broadcasted_iota(jnp.int32, (B, 2 * H), 1)
    state = jnp.where(lane < H, jnp.tanh(add_all[0:B, :]), 0.0)   # (B, 2H) f32

    # ---- waves 1..S: one dot + add + tanh per wave (fully unrolled) --------
    # state_in  = [h0_{w-1} | h1_{w-2}]
    # state_out = [h0_w     | h1_{w-1}]   (left half at w == S is unused)
    for w in range(1, S + 1):
        pre = jnp.dot(state.astype(bf16), wblk, preferred_element_type=f32)
        state = jnp.tanh(pre + add_all[w * B:(w + 1) * B, :])

    # ---- final Linear -------------------------------------------------------
    # wfc_ref: (2H, 128) with W_fc^T in rows H:2H (left/bogus half of `state`
    # hits zero rows), zero-padded lanes -> lane-dense unmasked output store.
    out_ref[...] = (jnp.dot(state.astype(bf16), wfc_ref[...].astype(bf16),
                            preferred_element_type=f32)
                    + bfc_ref[...]).astype(out_ref.dtype)


def init_params(key, input_dim, hidden_dim, output_dim):
    """PyTorch-style uniform(-1/sqrt(H), 1/sqrt(H)) init, deterministic."""
    ks = jax.random.split(key, 10)
    bound = 1.0 / jnp.sqrt(hidden_dim)
    u = lambda k, shape, b: jax.random.uniform(k, shape, jnp.float32, -b, b)
    return {
        # layer 0
        "W_ih0": u(ks[0], (hidden_dim, input_dim), bound),
        "W_hh0": u(ks[1], (hidden_dim, hidden_dim), bound),
        "b_ih0": u(ks[2], (hidden_dim,), bound),
        "b_hh0": u(ks[3], (hidden_dim,), bound),
        # layer 1
        "W_ih1": u(ks[4], (hidden_dim, hidden_dim), bound),
        "W_hh1": u(ks[5], (hidden_dim, hidden_dim), bound),
        "b_ih1": u(ks[6], (hidden_dim,), bound),
        "b_hh1": u(ks[7], (hidden_dim,), bound),
        # fc
        "W_fc": u(ks[8], (output_dim, hidden_dim), bound),
        "b_fc": u(ks[9], (output_dim,), bound),
    }


def recurrent_nn_forward(x, params):
    """x: (B, S, D_in) float32, batch_first as in the PyTorch module."""
    B, S, D = x.shape
    H = params["W_hh0"].shape[0]
    O = params["W_fc"].shape[0]
    O_pad = max(128, -(-O // 128) * 128)   # lane-dense output width

    # Time-major staging (row = t*B + b) + one extra all-zero timestep so the
    # epilogue wave reuses the same code path.  ~1 KB transpose: free.
    x_tm = jnp.transpose(x.astype(jnp.float32), (1, 0, 2)).reshape(S * B, D)
    x_tm = jnp.concatenate([x_tm, jnp.zeros((B, D), jnp.float32)], axis=0)

    # Fused / padded weight blocks (built once in the wrapper).
    w_in = jnp.concatenate(
        [params["W_ih0"].T, jnp.zeros((D, H), jnp.float32)], axis=1)      # (D, 2H)
    b_in = jnp.concatenate(
        [(params["b_ih0"] + params["b_hh0"]).reshape(1, H),
         (params["b_ih1"] + params["b_hh1"]).reshape(1, H)], axis=1)      # (1, 2H)
    w_blk = jnp.concatenate(
        [jnp.concatenate([params["W_hh0"].T, params["W_ih1"].T], axis=1),
         jnp.concatenate([jnp.zeros((H, H), jnp.float32),
                          params["W_hh1"].T], axis=1)], axis=0)           # (2H, 2H)
    w_fc = jnp.zeros((2 * H, O_pad), jnp.float32).at[H:, :O].set(params["W_fc"].T)
    b_fc = jnp.zeros((1, O_pad), jnp.float32).at[:, :O].set(
        params["b_fc"].reshape(1, O))

    vmem_spec = pl.BlockSpec(memory_space=pltpu.MemorySpace.VMEM)
    out_pad = pl.pallas_call(
        functools.partial(rnn_kernel, B=B, S=S, H=H),
        out_shape=jax.ShapeDtypeStruct((B, O_pad), jnp.float32),
        in_specs=[vmem_spec] * 6,
        out_specs=vmem_spec,
    )(x_tm, w_in, b_in, w_blk, w_fc, b_fc)
    return out_pad[:, :O]


def reference_forward(x, params):
    """Pure-JAX reference mirroring torch.nn.RNN (tanh) + Linear, eval mode."""
    B, S, D = x.shape
    H = params["W_hh0"].shape[0]

    def run_layer(seq, W_ih, W_hh, b_ih, b_hh):
        def step(h, x_t):
            h_new = jnp.tanh(x_t @ W_ih.T + b_ih + h @ W_hh.T + b_hh)
            return h_new, h_new
        h0 = jnp.zeros((B, H), jnp.float32)
        _, outs = jax.lax.scan(step, h0, jnp.transpose(seq, (1, 0, 2)))
        return jnp.transpose(outs, (1, 0, 2))  # (B, S, H)

    l0 = run_layer(x, params["W_ih0"], params["W_hh0"],
                   params["b_ih0"], params["b_hh0"])
    l1 = run_layer(l0, params["W_ih1"], params["W_hh1"],
                   params["b_ih1"], params["b_hh1"])
    return l1[:, -1, :] @ params["W_fc"].T + params["b_fc"]


if __name__ == "__main__":
    B, S, D_in, H, O = 2, 8, 16, 32, 8

    key = jax.random.PRNGKey(0)
    k_x, k_p = jax.random.split(key)
    x = jax.random.normal(k_x, (B, S, D_in), dtype=jnp.float32)
    params = init_params(k_p, D_in, H, O)

    out = recurrent_nn_forward(x, params)
    out = jax.block_until_ready(out)

    ref = reference_forward(x, params)
    assert out.shape == (B, O)
    # bf16 MXU operands (review-requested single-pass dots) loosen parity vs
    # the f32 reference; 2e-2 is ample for these magnitudes.
    assert jnp.allclose(out, ref, atol=2e-2, rtol=2e-2), "mismatch vs reference"

    print("KERNEL_OK")
</pallas_src>

<mosaic_0001>
module attributes {stable_mosaic.version = 11 : i64} {
  func.func @rnn_kernel(%arg0: memref<18x16xf32, #tpu.memory_space<vmem>>, %arg1: memref<16x64xf32, #tpu.memory_space<vmem>>, %arg2: memref<1x64xf32, #tpu.memory_space<vmem>>, %arg3: memref<64x64xf32, #tpu.memory_space<vmem>>, %arg4: memref<64x128xf32, #tpu.memory_space<vmem>>, %arg5: memref<1x128xf32, #tpu.memory_space<vmem>>, %arg6: memref<2x128xf32, #tpu.memory_space<vmem>>) attributes {dimension_semantics = [], scalar_prefetch = 0 : i64, scratch_operands = 0 : i64, tpu.core_type = #tpu.core_type<tc>} {
    %c0 = arith.constant 0 : index
    %c0_0 = arith.constant 0 : index
    %0 = vector.load %arg0[%c0, %c0_0] : memref<18x16xf32, #tpu.memory_space<vmem>>, vector<18x16xf32>
    %1 = arith.truncf %0 : vector<18x16xf32> to vector<18x16xbf16>
    %c0_1 = arith.constant 0 : index
    %c0_2 = arith.constant 0 : index
    %2 = vector.load %arg1[%c0_1, %c0_2] : memref<16x64xf32, #tpu.memory_space<vmem>>, vector<16x64xf32>
    %3 = arith.truncf %2 : vector<16x64xf32> to vector<16x64xbf16>
    %cst = arith.constant dense<0.000000e+00> : vector<18x64xf32>
    %4 = tpu.matmul %1, %3, %cst {dimension_numbers = #tpu.dot_dimension_numbers<[1], [0], [0], [1], [0, 0, 1, 1], [], []>} : vector<18x16xbf16>, vector<16x64xbf16>, vector<18x64xf32> -> vector<18x64xf32>
    %c0_3 = arith.constant 0 : index
    %c0_4 = arith.constant 0 : index
    %5 = vector.load %arg2[%c0_3, %c0_4] : memref<1x64xf32, #tpu.memory_space<vmem>>, vector<1x64xf32>
    %6 = vector.broadcast %5 : vector<1x64xf32> to vector<18x64xf32>
    %7 = arith.addf %4, %6 : vector<18x64xf32>
    %c0_5 = arith.constant 0 : index
    %c0_6 = arith.constant 0 : index
    %8 = vector.load %arg3[%c0_5, %c0_6] : memref<64x64xf32, #tpu.memory_space<vmem>>, vector<64x64xf32>
    %9 = arith.truncf %8 : vector<64x64xf32> to vector<64x64xbf16>
    %10 = tpu.iota {dimensions = array<i32: 1>} : vector<2x64xi32>
    %c32_i32 = arith.constant 32 : i32
    %11 = vector.broadcast %c32_i32 : i32 to vector<2x64xi32>
    %12 = arith.cmpi slt, %10, %11 : vector<2x64xi32>
    %13 = vector.extract_strided_slice %7 {offsets = [0, 0], sizes = [2, 64], strides = [1, 1]} : vector<18x64xf32> to vector<2x64xf32>
    %14 = math.tanh %13 : vector<2x64xf32>
    %cst_7 = arith.constant 0.000000e+00 : f32
    %15 = vector.broadcast %cst_7 : f32 to vector<2x64xf32>
    %16 = arith.select %12, %14, %15 : vector<2x64xi1>, vector<2x64xf32>
    %17 = arith.truncf %16 : vector<2x64xf32> to vector<2x64xbf16>
    %cst_8 = arith.constant dense<0.000000e+00> : vector<2x64xf32>
    %18 = tpu.matmul %17, %9, %cst_8 {dimension_numbers = #tpu.dot_dimension_numbers<[1], [0], [0], [1], [0, 0, 1, 1], [], []>} : vector<2x64xbf16>, vector<64x64xbf16>, vector<2x64xf32> -> vector<2x64xf32>
    %19 = vector.extract_strided_slice %7 {offsets = [2, 0], sizes = [2, 64], strides = [1, 1]} : vector<18x64xf32> to vector<2x64xf32>
    %20 = arith.addf %18, %19 : vector<2x64xf32>
    %21 = math.tanh %20 : vector<2x64xf32>
    %22 = arith.truncf %21 : vector<2x64xf32> to vector<2x64xbf16>
    %cst_9 = arith.constant dense<0.000000e+00> : vector<2x64xf32>
    %23 = tpu.matmul %22, %9, %cst_9 {dimension_numbers = #tpu.dot_dimension_numbers<[1], [0], [0], [1], [0, 0, 1, 1], [], []>} : vector<2x64xbf16>, vector<64x64xbf16>, vector<2x64xf32> -> vector<2x64xf32>
    %24 = vector.extract_strided_slice %7 {offsets = [4, 0], sizes = [2, 64], strides = [1, 1]} : vector<18x64xf32> to vector<2x64xf32>
    %25 = arith.addf %23, %24 : vector<2x64xf32>
    %26 = math.tanh %25 : vector<2x64xf32>
    %27 = arith.truncf %26 : vector<2x64xf32> to vector<2x64xbf16>
    %cst_10 = arith.constant dense<0.000000e+00> : vector<2x64xf32>
    %28 = tpu.matmul %27, %9, %cst_10 {dimension_numbers = #tpu.dot_dimension_numbers<[1], [0], [0], [1], [0, 0, 1, 1], [], []>} : vector<2x64xbf16>, vector<64x64xbf16>, vector<2x64xf32> -> vector<2x64xf32>
    %29 = vector.extract_strided_slice %7 {offsets = [6, 0], sizes = [2, 64], strides = [1, 1]} : vector<18x64xf32> to vector<2x64xf32>
    %30 = arith.addf %28, %29 : vector<2x64xf32>
    %31 = math.tanh %30 : vector<2x64xf32>
    %32 = arith.truncf %31 : vector<2x64xf32> to vector<2x64xbf16>
    %cst_11 = arith.constant dense<0.000000e+00> : vector<2x64xf32>
    %33 = tpu.matmul %32, %9, %cst_11 {dimension_numbers = #tpu.dot_dimension_numbers<[1], [0], [0], [1], [0, 0, 1, 1], [], []>} : vector<2x64xbf16>, vector<64x64xbf16>, vector<2x64xf32> -> vector<2x64xf32>
    %34 = vector.extract_strided_slice %7 {offsets = [8, 0], sizes = [2, 64], strides = [1, 1]} : vector<18x64xf32> to vector<2x64xf32>
    %35 = arith.addf %33, %34 : vector<2x64xf32>
    %36 = math.tanh %35 : vector<2x64xf32>
    %37 = arith.truncf %36 : vector<2x64xf32> to vector<2x64xbf16>
    %cst_12 = arith.constant dense<0.000000e+00> : vector<2x64xf32>
    %38 = tpu.matmul %37, %9, %cst_12 {dimension_numbers = #tpu.dot_dimension_numbers<[1], [0], [0], [1], [0, 0, 1, 1], [], []>} : vector<2x64xbf16>, vector<64x64xbf16>, vector<2x64xf32> -> vector<2x64xf32>
    %39 = vector.extract_strided_slice %7 {offsets = [10, 0], sizes = [2, 64], strides = [1, 1]} : vector<18x64xf32> to vector<2x64xf32>
    %40 = arith.addf %38, %39 : vector<2x64xf32>
    %41 = math.tanh %40 : vector<2x64xf32>
    %42 = arith.truncf %41 : vector<2x64xf32> to vector<2x64xbf16>
    %cst_13 = arith.constant dense<0.000000e+00> : vector<2x64xf32>
    %43 = tpu.matmul %42, %9, %cst_13 {dimension_numbers = #tpu.dot_dimension_numbers<[1], [0], [0], [1], [0, 0, 1, 1], [], []>} : vector<2x64xbf16>, vector<64x64xbf16>, vector<2x64xf32> -> vector<2x64xf32>
    %44 = vector.extract_strided_slice %7 {offsets = [12, 0], sizes = [2, 64], strides = [1, 1]} : vector<18x64xf32> to vector<2x64xf32>
    %45 = arith.addf %43, %44 : vector<2x64xf32>
    %46 = math.tanh %45 : vector<2x64xf32>
    %47 = arith.truncf %46 : vector<2x64xf32> to vector<2x64xbf16>
    %cst_14 = arith.constant dense<0.000000e+00> : vector<2x64xf32>
    %48 = tpu.matmul %47, %9, %cst_14 {dimension_numbers = #tpu.dot_dimension_numbers<[1], [0], [0], [1], [0, 0, 1, 1], [], []>} : vector<2x64xbf16>, vector<64x64xbf16>, vector<2x64xf32> -> vector<2x64xf32>
    %49 = vector.extract_strided_slice %7 {offsets = [14, 0], sizes = [2, 64], strides = [1, 1]} : vector<18x64xf32> to vector<2x64xf32>
    %50 = arith.addf %48, %49 : vector<2x64xf32>
    %51 = math.tanh %50 : vector<2x64xf32>
    %52 = arith.truncf %51 : vector<2x64xf32> to vector<2x64xbf16>
    %cst_15 = arith.constant dense<0.000000e+00> : vector<2x64xf32>
    %53 = tpu.matmul %52, %9, %cst_15 {dimension_numbers = #tpu.dot_dimension_numbers<[1], [0], [0], [1], [0, 0, 1, 1], [], []>} : vector<2x64xbf16>, vector<64x64xbf16>, vector<2x64xf32> -> vector<2x64xf32>
    %54 = vector.extract_strided_slice %7 {offsets = [16, 0], sizes = [2, 64], strides = [1, 1]} : vector<18x64xf32> to vector<2x64xf32>
    %55 = arith.addf %53, %54 : vector<2x64xf32>
    %56 = math.tanh %55 : vector<2x64xf32>
    %57 = arith.truncf %56 : vector<2x64xf32> to vector<2x64xbf16>
    %c0_16 = arith.constant 0 : index
    %c0_17 = arith.constant 0 : index
    %58 = vector.load %arg4[%c0_16, %c0_17] : memref<64x128xf32, #tpu.memory_space<vmem>>, vector<64x128xf32>
    %59 = arith.truncf %58 : vector<64x128xf32> to vector<64x128xbf16>
    %cst_18 = arith.constant dense<0.000000e+00> : vector<2x128xf32>
    %60 = tpu.matmul %57, %59, %cst_18 {dimension_numbers = #tpu.dot_dimension_numbers<[1], [0], [0], [1], [0, 0, 1, 1], [], []>} : vector<2x64xbf16>, vector<64x128xbf16>, vector<2x128xf32> -> vector<2x128xf32>
    %c0_19 = arith.constant 0 : index
    %c0_20 = arith.constant 0 : index
    %61 = vector.load %arg5[%c0_19, %c0_20] : memref<1x128xf32, #tpu.memory_space<vmem>>, vector<1x128xf32>
    %62 = vector.broadcast %61 : vector<1x128xf32> to vector<2x128xf32>
    %63 = arith.addf %60, %62 : vector<2x128xf32>
    %c0_21 = arith.constant 0 : index
    %c0_22 = arith.constant 0 : index
    %64 = vector.load %arg6[%c0_21, %c0_22] : memref<2x128xf32, #tpu.memory_space<vmem>>, vector<2x128xf32>
    tpu.vector_store %arg6[%c0_21, %c0_22], %63 {strides = array<i32>} : memref<2x128xf32, #tpu.memory_space<vmem>>, vector<2x128xf32>,
    return
  }
}

</mosaic_0001>

<llo_original>
// kernel: tpu_custom_call.1
$region0: #{tpu_custom_call.1}
  #allocation0 [shape = 'u32[]', space=smem, size = 0x4, offset = 0x4, fixed_abs, tag = 'smem constant byte address 0x4 - core index']
  #allocation1 [shape = 'u32[144,128]{1,0:T(1,128)}', space=vmem, size = 0x12000, scoped, tag = 'internal scratch']
  %s0 = inlined_call_operand.vmem [shape: f32[18,16], index: 0, kind: input, shape index: {}]
  %s1 = inlined_call_operand.vmem [shape: f32[16,64], index: 1, kind: input, shape index: {}]
  %s2 = inlined_call_operand.vmem [shape: f32[1,64], index: 2, kind: input, shape index: {}]
  %s3 = inlined_call_operand.hbm [shape: f32[64,64], index: 3, kind: input, shape index: {}]
  %s4 = inlined_call_operand.hbm [shape: f32[64,128], index: 4, kind: input, shape index: {}]
  %s5 = inlined_call_operand.vmem [shape: f32[1,128], index: 5, kind: input, shape index: {}]
  %s6 = inlined_call_operand.hbm [shape: f32[2,128], index: 6, kind: output, shape index: {}]
  %s7 = sld [smem:[#allocation0]]
  $region42: #{tpu_custom_call.1} parent=0
    _
  %s9 = ssub.s32 1, %s7
  %s10 = scalar_select 0, %s9, %s7
  $region1: #{tpu_custom_call.1} parent=0
    #allocation2 [shape = 'u8[32768]{0}', space=vmem, size = 0x8000, scoped, tag = 'input window, operand 3, single buffered']
    #allocation3 [shape = 's32[1]{0}', space=sflag, size = 0x4, scoped, tag = 'scoped memory for tpu_custom_call.1']
    #allocation4 [shape = 's32[1]{0}', space=sflag, size = 0x4, scoped, tag = 'scoped memory for tpu_custom_call.1']
    #allocation5 [shape = 'u8[32768]{0}', space=vmem, size = 0x8000, scoped, tag = 'input window, operand 4, single buffered']
    #allocation6 [shape = 's32[1]{0}', space=sflag, size = 0x4, scoped, tag = 'scoped memory for tpu_custom_call.1']
    #allocation7 [shape = 'u8[1024]{0}', space=vmem, size = 0x400, scoped, tag = 'output window, operand 0, single buffered']
    %11 = vsyncpa [#allocation3], 0
    %12 = vsyncpa [#allocation6], 0
    %13 = vsyncpa [#allocation4], 0
    // Predicated region
    $region2: #{tpu_custom_call.1} parent=1 // pred_check
      _
    $region3: #{tpu_custom_call.1} parent=1 // pred_check_branch
      %15 = sbr.rel (0) target = $region5
    $region4: #{tpu_custom_call.1} parent=1 // pred_region
      _
    $region5: #{tpu_custom_call.1} parent=1 // pred_fallthru
      _
    // Predicated region
    $region6: #{tpu_custom_call.1} parent=1 // pred_check
      _
    $region7: #{tpu_custom_call.1} parent=1 // pred_check_branch
      %17 = sbr.rel (0) target = $region9
    $region8: #{tpu_custom_call.1} parent=1 // pred_region
      _
    $region9: #{tpu_custom_call.1} parent=1 // pred_fallthru
      _
    // Predicated region
    $region10: #{tpu_custom_call.1} parent=1 // pred_check
      _
    $region11: #{tpu_custom_call.1} parent=1 // pred_check_branch
      %19 = sbr.rel (0) target = $region13
    $region12: #{tpu_custom_call.1} parent=1 // pred_region
      _
    $region13: #{tpu_custom_call.1} parent=1 // pred_fallthru
      _
    // Predicated region
    $region14: #{tpu_custom_call.1} parent=1 // pred_check
      _
    $region15: #{tpu_custom_call.1} parent=1 // pred_check_branch
      %21 = sbr.rel (0) target = $region17
    $region16: #{tpu_custom_call.1} parent=1 // pred_region
      %s23 = ssub.s32 1024, 1024
      %24 = vsyncadd [#allocation3], %s23
      %s25 = sshll.u32 [#allocation2], 4
      %s26 = int_to_ptr.vmem [resolvable:$true] %s25
      %31 = dma.hbm_to_vmem [thread:$0]  %s3, 1024, %s26, [#allocation3], 128, 128, 8
    $region17: #{tpu_custom_call.1} parent=1 // pred_fallthru
      _
    // Predicated region
    $region18: #{tpu_custom_call.1} parent=1 // pred_check
      _
    $region19: #{tpu_custom_call.1} parent=1 // pred_check_branch
      %33 = sbr.rel (0) target = $region21
    $region20: #{tpu_custom_call.1} parent=1 // pred_region
      %s35 = ssub.s32 1024, 1024
      %36 = vsyncadd [#allocation6], %s35
      %s37 = sshll.u32 [#allocation5], 4
      %s38 = int_to_ptr.vmem [resolvable:$true] %s37
      %43 = dma.hbm_to_vmem [thread:$0]  %s4, 1024, %s38, [#allocation6], 128, 128, 8
    $region21: #{tpu_custom_call.1} parent=1 // pred_fallthru
      _
    // Predicated region
    $region22: #{tpu_custom_call.1} parent=1 // pred_check
      _
    $region23: #{tpu_custom_call.1} parent=1 // pred_check_branch
      %45 = sbr.rel (0) target = $region25
    $region24: #{tpu_custom_call.1} parent=1 // pred_region
      _
    $region25: #{tpu_custom_call.1} parent=1 // pred_fallthru
      _
    // Predicated region
    $region26: #{tpu_custom_call.1} parent=1 // pred_check
      _
    $region27: #{tpu_custom_call.1} parent=1 // pred_check_branch
      %47 = sbr.rel (0) target = $region29
    $region28: #{tpu_custom_call.1} parent=1 // pred_region
      %48 = dma.done [#allocation3], 1024
    $region29: #{tpu_custom_call.1} parent=1 // pred_fallthru
      _
    // Predicated region
    $region30: #{tpu_custom_call.1} parent=1 // pred_check
      _
    $region31: #{tpu_custom_call.1} parent=1 // pred_check_branch
      %50 = sbr.rel (0) target = $region33
    $region32: #{tpu_custom_call.1} parent=1 // pred_region
      %51 = dma.done [#allocation6], 1024
    $region33: #{tpu_custom_call.1} parent=1 // pred_fallthru
      _
    %v53 = vld [vmem:[%s0] sm:$0xff]
    %v54 = vld [vmem:[%s0 + $0x8] sm:$0xff]
    %v55 = vld [vmem:[%s0 + $0x10] sm:$0x3]
    %v56 = vpack.c.bf16 %v54, %v53
    %v57 = vpack.c.bf16 %v55, %v55
    %v58 = vld [vmem:[%s1] sm:$0xff]
    %v59 = vld [vmem:[%s1 + $0x8] sm:$0xff]
    %v60 = vpack.c.bf16 %v59, %v58
    %v61 = vld [vmem:[%s2] sm:$0x1]
    %v63 = vlaneseq
    %v64 = vshrl.u32 %v63, 7
    %v65 = vsub.s32 0, %v64
    %v66 = vrot.slane %v61, %v65
    %vm68 = vcmask 130048
    %v70 = vsel %vm68, %v56, 0
    %v73 = vsel %vm68, %v57, 0
    %75 = vmatprep.subr.bf16.mxu0 0
    %76 = vmatpush1.bf16.msra.mxu0 %v60
    %77 = vmatprep.subr.bf16.mxu0 0
    %78 = vmatpush1.bf16.msra.mxu0 0
    %79 = vmatprep.subr.bf16.mxu0 0
    %80 = vmatpush1.bf16.msra.mxu0 0
    %81 = vmatprep.subr.bf16.mxu0 0
    %82 = vmatpush1.bf16.msra.mxu0 0
    %83 = vmatprep.subr.bf16.mxu0 0
    %84 = vmatpush1.bf16.msra.mxu0 0
    %85 = vmatprep.subr.bf16.mxu0 0
    %86 = vmatpush1.bf16.msra.mxu0 0
    %87 = vmatprep.subr.bf16.mxu0 0
    %88 = vmatpush1.bf16.msra.mxu0 0
    %89 = vmatprep.subr.bf16.mxu0 0
    %90 = vmatpush1.bf16.msra.mxu0 0
    %91 = vmatprep.subr.bf16.mxu0 0
    %92 = vmatpush1.bf16.msra.mxu0 0
    %93 = vmatprep.subr.bf16.mxu0 0
    %94 = vmatpush1.bf16.msra.mxu0 0
    %95 = vmatprep.subr.bf16.mxu0 0
    %96 = vmatpush1.bf16.msra.mxu0 0
    %97 = vmatprep.subr.bf16.mxu0 0
    %98 = vmatpush1.bf16.msra.mxu0 0
    %99 = vmatprep.subr.bf16.mxu0 0
    %100 = vmatpush1.bf16.msra.mxu0 0
    %101 = vmatprep.subr.bf16.mxu0 0
    %102 = vmatpush1.bf16.msra.mxu0 0
    %103 = vmatprep.subr.bf16.mxu0 0
    %104 = vmatpush1.bf16.msra.mxu0 0
    %105 = vmatprep.subr.bf16.mxu0 0
    %106 = vmatpush1.bf16.msra.mxu0 0
    %107 = vmatprep.mubr.bf16.mxu0 0
    %108 = vmatmul.mubr.bf16.gmra.mrb[0].mxu0 %v70
    %v109 = vpop.f32.mrb[0].mxu0
    %v110 = vadd.f32 %v66, %v109
    %v111 = vpop.f32.mrb[0].mxu0
    %v112 = vpop.f32.mrb[0].mxu0
    %v113 = vadd.f32 %v66, %v112
    %v114 = vpop.f32.mrb[0].mxu0
    %115 = vmatprep.mubr.bf16.mxu0 0
    %116 = vmatmul.mubr.bf16.gmra.mrb[0].mxu0 %v73
    %v117 = vpop.f32.mrb[0].mxu0
    %v118 = vadd.f32 %v66, %v117
    %v119 = vpop.f32.mrb[0].mxu0
    %v120 = vpop.f32.mrb[0].mxu0
    %v121 = vpop.f32.mrb[0].mxu0
    %122 = vdwg.mxu0
    %v123 = vld [vmem:[#allocation2] sm:$0xff]
    %v124 = vld [vmem:[#allocation2 + $0x8] sm:$0xff]
    %v125 = vld [vmem:[#allocation2 + $0x10] sm:$0xff]
    %v126 = vld [vmem:[#allocation2 + $0x18] sm:$0xff]
    %v127 = vld [vmem:[#allocation2 + $0x20] sm:$0xff]
    %v128 = vld [vmem:[#allocation2 + $0x28] sm:$0xff]
    %v129 = vld [vmem:[#allocation2 + $0x30] sm:$0xff]
    %v130 = vld [vmem:[#allocation2 + $0x38] sm:$0xff]
    %v131 = vpack.c.bf16 %v124, %v123
    %v132 = vpack.c.bf16 %v126, %v125
    %v133 = vpack.c.bf16 %v128, %v127
    %v134 = vpack.c.bf16 %v130, %v129
    %v135 = vlaneseq
    %v136 = vand.u32 %v135, 127
    %vm137 = vcmp.lt.s32.totalorder %v136, 32
    %v138 = vtanh.pop %v110
    %v139 = vsel %vm137, %v138, 0.0
    %v140 = vpack.c.bf16 %v139, %v139
    %v142 = vrot.slane %v110, 2
    %vm144 = vcmask 523264
    %v146 = vsel %vm144, %v140, 0
    %148 = vmatprep.subr.bf16.mxu0 0
    %149 = vmatpush1.bf16.msra.mxu0 %v131
    %150 = vmatprep.subr.bf16.mxu0 0
    %151 = vmatpush1.bf16.msra.mxu0 %v132
    %152 = vmatprep.subr.bf16.mxu0 0
    %153 = vmatpush1.bf16.msra.mxu0 %v133
    %154 = vmatprep.subr.bf16.mxu0 0
    %155 = vmatpush1.bf16.msra.mxu0 %v134
    %156 = vmatprep.subr.bf16.mxu0 0
    %157 = vmatpush1.bf16.msra.mxu0 0
    %158 = vmatprep.subr.bf16.mxu0 0
    %159 = vmatpush1.bf16.msra.mxu0 0
    %160 = vmatprep.subr.bf16.mxu0 0
    %161 = vmatpush1.bf16.msra.mxu0 0
    %162 = vmatprep.subr.bf16.mxu0 0
    %163 = vmatpush1.bf16.msra.mxu0 0
    %164 = vmatprep.subr.bf16.mxu0 0
    %165 = vmatpush1.bf16.msra.mxu0 0
    %166 = vmatprep.subr.bf16.mxu0 0
    %167 = vmatpush1.bf16.msra.mxu0 0
    %168 = vmatprep.subr.bf16.mxu0 0
    %169 = vmatpush1.bf16.msra.mxu0 0
    %170 = vmatprep.subr.bf16.mxu0 0
    %171 = vmatpush1.bf16.msra.mxu0 0
    %172 = vmatprep.subr.bf16.mxu0 0
    %173 = vmatpush1.bf16.msra.mxu0 0
    %174 = vmatprep.subr.bf16.mxu0 0
    %175 = vmatpush1.bf16.msra.mxu0 0
    %176 = vmatprep.subr.bf16.mxu0 0
    %177 = vmatpush1.bf16.msra.mxu0 0
    %178 = vmatprep.subr.bf16.mxu0 0
    %179 = vmatpush1.bf16.msra.mxu0 0
    %180 = vmatprep.mubr.bf16.mxu0 0
    %181 = vmatmul.mubr.bf16.gmra.mrb[0].mxu0 %v146
    %v182 = vpop.f32.mrb[0].mxu0
    %v183 = vadd.f32 %v142, %v182
    %v184 = vpop.f32.mrb[0].mxu0
    %v185 = vpop.f32.mrb[0].mxu0
    %v186 = vpop.f32.mrb[0].mxu0
    %187 = vdwg.mxu0
    %v188 = vtanh.pop %v183
    %v189 = vpack.c.bf16 %v188, %v188
    %v190 = vrot.slane %v110, 4
    %v193 = vsel %vm144, %v189, 0
    %195 = vmatprep.subr.bf16.mxu0 0
    %196 = vmatpush1.bf16.msra.mxu0 %v131
    %197 = vmatprep.subr.bf16.mxu0 0
    %198 = vmatpush1.bf16.msra.mxu0 %v132
    %199 = vmatprep.subr.bf16.mxu0 0
    %200 = vmatpush1.bf16.msra.mxu0 %v133
    %201 = vmatprep.subr.bf16.mxu0 0
    %202 = vmatpush1.bf16.msra.mxu0 %v134
    %203 = vmatprep.subr.bf16.mxu0 0
    %204 = vmatpush1.bf16.msra.mxu0 0
    %205 = vmatprep.subr.bf16.mxu0 0
    %206 = vmatpush1.bf16.msra.mxu0 0
    %207 = vmatprep.subr.bf16.mxu0 0
    %208 = vmatpush1.bf16.msra.mxu0 0
    %209 = vmatprep.subr.bf16.mxu0 0
    %210 = vmatpush1.bf16.msra.mxu0 0
    %211 = vmatprep.subr.bf16.mxu0 0
    %212 = vmatpush1.bf16.msra.mxu0 0
    %213 = vmatprep.subr.bf16.mxu0 0
    %214 = vmatpush1.bf16.msra.mxu0 0
    %215 = vmatprep.subr.bf16.mxu0 0
    %216 = vmatpush1.bf16.msra.mxu0 0
    %217 = vmatprep.subr.bf16.mxu0 0
    %218 = vmatpush1.bf16.msra.mxu0 0
    %219 = vmatprep.subr.bf16.mxu0 0
    %220 = vmatpush1.bf16.msra.mxu0 0
    %221 = vmatprep.subr.bf16.mxu0 0
    %222 = vmatpush1.bf16.msra.mxu0 0
    %223 = vmatprep.subr.bf16.mxu0 0
    %224 = vmatpush1.bf16.msra.mxu0 0
    %225 = vmatprep.subr.bf16.mxu0 0
    %226 = vmatpush1.bf16.msra.mxu0 0
    %227 = vmatprep.mubr.bf16.mxu0 0
    %228 = vmatmul.mubr.bf16.gmra.mrb[0].mxu0 %v193
    %v229 = vpop.f32.mrb[0].mxu0
    %v230 = vadd.f32 %v190, %v229
    %v231 = vpop.f32.mrb[0].mxu0
    %v232 = vpop.f32.mrb[0].mxu0
    %v233 = vpop.f32.mrb[0].mxu0
    %234 = vdwg.mxu0
    %v235 = vtanh.pop %v230
    %v236 = vpack.c.bf16 %v235, %v235
    %v237 = vrot.slane %v110, 6
    %v240 = vsel %vm144, %v236, 0
    %242 = vmatprep.subr.bf16.mxu0 0
    %243 = vmatpush1.bf16.msra.mxu0 %v131
    %244 = vmatprep.subr.bf16.mxu0 0
    %245 = vmatpush1.bf16.msra.mxu0 %v132
    %246 = vmatprep.subr.bf16.mxu0 0
    %247 = vmatpush1.bf16.msra.mxu0 %v133
    %248 = vmatprep.subr.bf16.mxu0 0
    %249 = vmatpush1.bf16.msra.mxu0 %v134
    %250 = vmatprep.subr.bf16.mxu0 0
    %251 = vmatpush1.bf16.msra.mxu0 0
    %252 = vmatprep.subr.bf16.mxu0 0
    %253 = vmatpush1.bf16.msra.mxu0 0
    %254 = vmatprep.subr.bf16.mxu0 0
    %255 = vmatpush1.bf16.msra.mxu0 0
    %256 = vmatprep.subr.bf16.mxu0 0
    %257 = vmatpush1.bf16.msra.mxu0 0
    %258 = vmatprep.subr.bf16.mxu0 0
    %259 = vmatpush1.bf16.msra.mxu0 0
    %260 = vmatprep.subr.bf16.mxu0 0
    %261 = vmatpush1.bf16.msra.mxu0 0
    %262 = vmatprep.subr.bf16.mxu0 0
    %263 = vmatpush1.bf16.msra.mxu0 0
    %264 = vmatprep.subr.bf16.mxu0 0
    %265 = vmatpush1.bf16.msra.mxu0 0
    %266 = vmatprep.subr.bf16.mxu0 0
    %267 = vmatpush1.bf16.msra.mxu0 0
    %268 = vmatprep.subr.bf16.mxu0 0
    %269 = vmatpush1.bf16.msra.mxu0 0
    %270 = vmatprep.subr.bf16.mxu0 0
    %271 = vmatpush1.bf16.msra.mxu0 0
    %272 = vmatprep.subr.bf16.mxu0 0
    %273 = vmatpush1.bf16.msra.mxu0 0
    %274 = vmatprep.mubr.bf16.mxu0 0
    %275 = vmatmul.mubr.bf16.gmra.mrb[0].mxu0 %v240
    %v276 = vpop.f32.mrb[0].mxu0
    %v277 = vadd.f32 %v237, %v276
    %v278 = vpop.f32.mrb[0].mxu0
    %v279 = vpop.f32.mrb[0].mxu0
    %v280 = vpop.f32.mrb[0].mxu0
    %281 = vdwg.mxu0
    %v282 = vtanh.pop %v277
    %v283 = vpack.c.bf16 %v282, %v282
    %v285 = vsel %vm144, %v283, 0
    %287 = vmatprep.subr.bf16.mxu0 0
    %288 = vmatpush1.bf16.msra.mxu0 %v131
    %289 = vmatprep.subr.bf16.mxu0 0
    %290 = vmatpush1.bf16.msra.mxu0 %v132
    %291 = vmatprep.subr.bf16.mxu0 0
    %292 = vmatpush1.bf16.msra.mxu0 %v133
    %293 = vmatprep.subr.bf16.mxu0 0
    %294 = vmatpush1.bf16.msra.mxu0 %v134
    %295 = vmatprep.subr.bf16.mxu0 0
    %296 = vmatpush1.bf16.msra.mxu0 0
    %297 = vmatprep.subr.bf16.mxu0 0
    %298 = vmatpush1.bf16.msra.mxu0 0
    %299 = vmatprep.subr.bf16.mxu0 0
    %300 = vmatpush1.bf16.msra.mxu0 0
    %301 = vmatprep.subr.bf16.mxu0 0
    %302 = vmatpush1.bf16.msra.mxu0 0
    %303 = vmatprep.subr.bf16.mxu0 0
    %304 = vmatpush1.bf16.msra.mxu0 0
    %305 = vmatprep.subr.bf16.mxu0 0
    %306 = vmatpush1.bf16.msra.mxu0 0
    %307 = vmatprep.subr.bf16.mxu0 0
    %308 = vmatpush1.bf16.msra.mxu0 0
    %309 = vmatprep.subr.bf16.mxu0 0
    %310 = vmatpush1.bf16.msra.mxu0 0
    %311 = vmatprep.subr.bf16.mxu0 0
    %312 = vmatpush1.bf16.msra.mxu0 0
    %313 = vmatprep.subr.bf16.mxu0 0
    %314 = vmatpush1.bf16.msra.mxu0 0
    %315 = vmatprep.subr.bf16.mxu0 0
    %316 = vmatpush1.bf16.msra.mxu0 0
    %317 = vmatprep.subr.bf16.mxu0 0
    %318 = vmatpush1.bf16.msra.mxu0 0
    %319 = vmatprep.mubr.bf16.mxu0 0
    %320 = vmatmul.mubr.bf16.gmra.mrb[0].mxu0 %v285
    %v321 = vpop.f32.mrb[0].mxu0
    %v322 = vadd.f32 %v113, %v321
    %v323 = vpop.f32.mrb[0].mxu0
    %v324 = vpop.f32.mrb[0].mxu0
    %v325 = vpop.f32.mrb[0].mxu0
    %326 = vdwg.mxu0
    %v327 = vtanh.pop %v322
    %v328 = vpack.c.bf16 %v327, %v327
    %v330 = vrot.slane %v113, 2
    %v333 = vsel %vm144, %v328, 0
    %335 = vmatprep.subr.bf16.mxu0 0
    %336 = vmatpush1.bf16.msra.mxu0 %v131
    %337 = vmatprep.subr.bf16.mxu0 0
    %338 = vmatpush1.bf16.msra.mxu0 %v132
    %339 = vmatprep.subr.bf16.mxu0 0
    %340 = vmatpush1.bf16.msra.mxu0 %v133
    %341 = vmatprep.subr.bf16.mxu0 0
    %342 = vmatpush1.bf16.msra.mxu0 %v134
    %343 = vmatprep.subr.bf16.mxu0 0
    %344 = vmatpush1.bf16.msra.mxu0 0
    %345 = vmatprep.subr.bf16.mxu0 0
    %346 = vmatpush1.bf16.msra.mxu0 0
    %347 = vmatprep.subr.bf16.mxu0 0
    %348 = vmatpush1.bf16.msra.mxu0 0
    %349 = vmatprep.subr.bf16.mxu0 0
    %350 = vmatpush1.bf16.msra.mxu0 0
    %351 = vmatprep.subr.bf16.mxu0 0
    %352 = vmatpush1.bf16.msra.mxu0 0
    %353 = vmatprep.subr.bf16.mxu0 0
    %354 = vmatpush1.bf16.msra.mxu0 0
    %355 = vmatprep.subr.bf16.mxu0 0
    %356 = vmatpush1.bf16.msra.mxu0 0
    %357 = vmatprep.subr.bf16.mxu0 0
    %358 = vmatpush1.bf16.msra.mxu0 0
    %359 = vmatprep.subr.bf16.mxu0 0
    %360 = vmatpush1.bf16.msra.mxu0 0
    %361 = vmatprep.subr.bf16.mxu0 0
    %362 = vmatpush1.bf16.msra.mxu0 0
    %363 = vmatprep.subr.bf16.mxu0 0
    %364 = vmatpush1.bf16.msra.mxu0 0
    %365 = vmatprep.subr.bf16.mxu0 0
    %366 = vmatpush1.bf16.msra.mxu0 0
    %367 = vmatprep.mubr.bf16.mxu0 0
    %368 = vmatmul.mubr.bf16.gmra.mrb[0].mxu0 %v333
    %v369 = vpop.f32.mrb[0].mxu0
    %v370 = vadd.f32 %v330, %v369
    %v371 = vpop.f32.mrb[0].mxu0
    %v372 = vpop.f32.mrb[0].mxu0
    %v373 = vpop.f32.mrb[0].mxu0
    %374 = vdwg.mxu0
    %v375 = vtanh.pop %v370
    %v376 = vpack.c.bf16 %v375, %v375
    %v377 = vrot.slane %v113, 4
    %v380 = vsel %vm144, %v376, 0
    %382 = vmatprep.subr.bf16.mxu0 0
    %383 = vmatpush1.bf16.msra.mxu0 %v131
    %384 = vmatprep.subr.bf16.mxu0 0
    %385 = vmatpush1.bf16.msra.mxu0 %v132
    %386 = vmatprep.subr.bf16.mxu0 0
    %387 = vmatpush1.bf16.msra.mxu0 %v133
    %388 = vmatprep.subr.bf16.mxu0 0
    %389 = vmatpush1.bf16.msra.mxu0 %v134
    %390 = vmatprep.subr.bf16.mxu0 0
    %391 = vmatpush1.bf16.msra.mxu0 0
    %392 = vmatprep.subr.bf16.mxu0 0
    %393 = vmatpush1.bf16.msra.mxu0 0
    %394 = vmatprep.subr.bf16.mxu0 0
    %395 = vmatpush1.bf16.msra.mxu0 0
    %396 = vmatprep.subr.bf16.mxu0 0
    %397 = vmatpush1.bf16.msra.mxu0 0
    %398 = vmatprep.subr.bf16.mxu0 0
    %399 = vmatpush1.bf16.msra.mxu0 0
    %400 = vmatprep.subr.bf16.mxu0 0
    %401 = vmatpush1.bf16.msra.mxu0 0
    %402 = vmatprep.subr.bf16.mxu0 0
    %403 = vmatpush1.bf16.msra.mxu0 0
    %404 = vmatprep.subr.bf16.mxu0 0
    %405 = vmatpush1.bf16.msra.mxu0 0
    %406 = vmatprep.subr.bf16.mxu0 0
    %407 = vmatpush1.bf16.msra.mxu0 0
    %408 = vmatprep.subr.bf16.mxu0 0
    %409 = vmatpush1.bf16.msra.mxu0 0
    %410 = vmatprep.subr.bf16.mxu0 0
    %411 = vmatpush1.bf16.msra.mxu0 0
    %412 = vmatprep.subr.bf16.mxu0 0
    %413 = vmatpush1.bf16.msra.mxu0 0
    %414 = vmatprep.mubr.bf16.mxu0 0
    %415 = vmatmul.mubr.bf16.gmra.mrb[0].mxu0 %v380
    %v416 = vpop.f32.mrb[0].mxu0
    %v417 = vadd.f32 %v377, %v416
    %v418 = vpop.f32.mrb[0].mxu0
    %v419 = vpop.f32.mrb[0].mxu0
    %v420 = vpop.f32.mrb[0].mxu0
    %421 = vdwg.mxu0
    %v422 = vtanh.pop %v417
    %v423 = vpack.c.bf16 %v422, %v422
    %v424 = vrot.slane %v113, 6
    %v427 = vsel %vm144, %v423, 0
    %429 = vmatprep.subr.bf16.mxu0 0
    %430 = vmatpush1.bf16.msra.mxu0 %v131
    %431 = vmatprep.subr.bf16.mxu0 0
    %432 = vmatpush1.bf16.msra.mxu0 %v132
    %433 = vmatprep.subr.bf16.mxu0 0
    %434 = vmatpush1.bf16.msra.mxu0 %v133
    %435 = vmatprep.subr.bf16.mxu0 0
    %436 = vmatpush1.bf16.msra.mxu0 %v134
    %437 = vmatprep.subr.bf16.mxu0 0
    %438 = vmatpush1.bf16.msra.mxu0 0
    %439 = vmatprep.subr.bf16.mxu0 0
    %440 = vmatpush1.bf16.msra.mxu0 0
    %441 = vmatprep.subr.bf16.mxu0 0
    %442 = vmatpush1.bf16.msra.mxu0 0
    %443 = vmatprep.subr.bf16.mxu0 0
    %444 = vmatpush1.bf16.msra.mxu0 0
    %445 = vmatprep.subr.bf16.mxu0 0
    %446 = vmatpush1.bf16.msra.mxu0 0
    %447 = vmatprep.subr.bf16.mxu0 0
    %448 = vmatpush1.bf16.msra.mxu0 0
    %449 = vmatprep.subr.bf16.mxu0 0
    %450 = vmatpush1.bf16.msra.mxu0 0
    %451 = vmatprep.subr.bf16.mxu0 0
    %452 = vmatpush1.bf16.msra.mxu0 0
    %453 = vmatprep.subr.bf16.mxu0 0
    %454 = vmatpush1.bf16.msra.mxu0 0
    %455 = vmatprep.subr.bf16.mxu0 0
    %456 = vmatpush1.bf16.msra.mxu0 0
    %457 = vmatprep.subr.bf16.mxu0 0
    %458 = vmatpush1.bf16.msra.mxu0 0
    %459 = vmatprep.subr.bf16.mxu0 0
    %460 = vmatpush1.bf16.msra.mxu0 0
    %461 = vmatprep.mubr.bf16.mxu0 0
    %462 = vmatmul.mubr.bf16.gmra.mrb[0].mxu0 %v427
    %v463 = vpop.f32.mrb[0].mxu0
    %v464 = vadd.f32 %v424, %v463
    %v465 = vpop.f32.mrb[0].mxu0
    %v466 = vpop.f32.mrb[0].mxu0
    %v467 = vpop.f32.mrb[0].mxu0
    %468 = vdwg.mxu0
    %v469 = vtanh.pop %v464
    %v470 = vpack.c.bf16 %v469, %v469
    %v472 = vsel %vm144, %v470, 0
    %474 = vmatprep.subr.bf16.mxu0 0
    %475 = vmatpush1.bf16.msra.mxu0 %v131
    %476 = vmatprep.subr.bf16.mxu0 0
    %477 = vmatpush1.bf16.msra.mxu0 %v132
    %478 = vmatprep.subr.bf16.mxu0 0
    %479 = vmatpush1.bf16.msra.mxu0 %v133
    %480 = vmatprep.subr.bf16.mxu0 0
    %481 = vmatpush1.bf16.msra.mxu0 %v134
    %482 = vmatprep.subr.bf16.mxu0 0
    %483 = vmatpush1.bf16.msra.mxu0 0
    %484 = vmatprep.subr.bf16.mxu0 0
    %485 = vmatpush1.bf16.msra.mxu0 0
    %486 = vmatprep.subr.bf16.mxu0 0
    %487 = vmatpush1.bf16.msra.mxu0 0
    %488 = vmatprep.subr.bf16.mxu0 0
    %489 = vmatpush1.bf16.msra.mxu0 0
    %490 = vmatprep.subr.bf16.mxu0 0
    %491 = vmatpush1.bf16.msra.mxu0 0
    %492 = vmatprep.subr.bf16.mxu0 0
    %493 = vmatpush1.bf16.msra.mxu0 0
    %494 = vmatprep.subr.bf16.mxu0 0
    %495 = vmatpush1.bf16.msra.mxu0 0
    %496 = vmatprep.subr.bf16.mxu0 0
    %497 = vmatpush1.bf16.msra.mxu0 0
    %498 = vmatprep.subr.bf16.mxu0 0
    %499 = vmatpush1.bf16.msra.mxu0 0
    %500 = vmatprep.subr.bf16.mxu0 0
    %501 = vmatpush1.bf16.msra.mxu0 0
    %502 = vmatprep.subr.bf16.mxu0 0
    %503 = vmatpush1.bf16.msra.mxu0 0
    %504 = vmatprep.subr.bf16.mxu0 0
    %505 = vmatpush1.bf16.msra.mxu0 0
    %506 = vmatprep.mubr.bf16.mxu0 0
    %507 = vmatmul.mubr.bf16.gmra.mrb[0].mxu0 %v472
    %v508 = vpop.f32.mrb[0].mxu0
    %v509 = vadd.f32 %v118, %v508
    %v510 = vpop.f32.mrb[0].mxu0
    %v511 = vpop.f32.mrb[0].mxu0
    %v512 = vpop.f32.mrb[0].mxu0
    %513 = vdwg.mxu0
    %v514 = vtanh.pop %v509
    %v515 = vpack.c.bf16 %v514, %v514
    %v516 = vld [vmem:[#allocation5] sm:$0xff]
    %v517 = vld [vmem:[#allocation5 + $0x8] sm:$0xff]
    %v518 = vld [vmem:[#allocation5 + $0x10] sm:$0xff]
    %v519 = vld [vmem:[#allocation5 + $0x18] sm:$0xff]
    %v520 = vld [vmem:[#allocation5 + $0x20] sm:$0xff]
    %v521 = vld [vmem:[#allocation5 + $0x28] sm:$0xff]
    %v522 = vld [vmem:[#allocation5 + $0x30] sm:$0xff]
    %v523 = vld [vmem:[#allocation5 + $0x38] sm:$0xff]
    %v524 = vpack.c.bf16 %v517, %v516
    %v525 = vpack.c.bf16 %v519, %v518
    %v526 = vpack.c.bf16 %v521, %v520
    %v527 = vpack.c.bf16 %v523, %v522
    %v528 = vld [vmem:[%s5] sm:$0x1]
    %v530 = vlaneseq
    %v531 = vshrl.u32 %v530, 7
    %v532 = vsub.s32 0, %v531
    %v533 = vrot.slane %v528, %v532
    %v536 = vsel %vm144, %v515, 0
    %538 = vmatprep.subr.bf16.mxu0 0
    %539 = vmatpush1.bf16.msra.mxu0 %v524
    %540 = vmatprep.subr.bf16.mxu0 0
    %541 = vmatpush1.bf16.msra.mxu0 %v525
    %542 = vmatprep.subr.bf16.mxu0 0
    %543 = vmatpush1.bf16.msra.mxu0 %v526
    %544 = vmatprep.subr.bf16.mxu0 0
    %545 = vmatpush1.bf16.msra.mxu0 %v527
    %546 = vmatprep.subr.bf16.mxu0 0
    %547 = vmatpush1.bf16.msra.mxu0 0
    %548 = vmatprep.subr.bf16.mxu0 0
    %549 = vmatpush1.bf16.msra.mxu0 0
    %550 = vmatprep.subr.bf16.mxu0 0
    %551 = vmatpush1.bf16.msra.mxu0 0
    %552 = vmatprep.subr.bf16.mxu0 0
    %553 = vmatpush1.bf16.msra.mxu0 0
    %554 = vmatprep.subr.bf16.mxu0 0
    %555 = vmatpush1.bf16.msra.mxu0 0
    %556 = vmatprep.subr.bf16.mxu0 0
    %557 = vmatpush1.bf16.msra.mxu0 0
    %558 = vmatprep.subr.bf16.mxu0 0
    %559 = vmatpush1.bf16.msra.mxu0 0
    %560 = vmatprep.subr.bf16.mxu0 0
    %561 = vmatpush1.bf16.msra.mxu0 0
    %562 = vmatprep.subr.bf16.mxu0 0
    %563 = vmatpush1.bf16.msra.mxu0 0
    %564 = vmatprep.subr.bf16.mxu0 0
    %565 = vmatpush1.bf16.msra.mxu0 0
    %566 = vmatprep.subr.bf16.mxu0 0
    %567 = vmatpush1.bf16.msra.mxu0 0
    %568 = vmatprep.subr.bf16.mxu0 0
    %569 = vmatpush1.bf16.msra.mxu0 0
    %570 = vmatprep.mubr.bf16.mxu0 0
    %571 = vmatmul.mubr.bf16.gmra.mrb[0].mxu0 %v536
    %v572 = vpop.f32.mrb[0].mxu0
    %v573 = vadd.f32 %v533, %v572
    %v574 = vpop.f32.mrb[0].mxu0
    %v575 = vpop.f32.mrb[0].mxu0
    %v576 = vpop.f32.mrb[0].mxu0
    %577 = vdwg.mxu0
    %578 = vst [vmem:[#allocation7] sm:$0x3] %v573
    // Predicated region
    $region34: #{tpu_custom_call.1} parent=1 // pred_check
      _
    $region35: #{tpu_custom_call.1} parent=1 // pred_check_branch
      %580 = sbr.rel (0) target = $region37
    $region36: #{tpu_custom_call.1} parent=1 // pred_region
      %s582 = ssub.s32 32, 32
      %583 = vsyncadd [#allocation4], %s582
      %s585 = sshll.u32 [#allocation7], 4
      %s586 = int_to_ptr.vmem [resolvable:$true] %s585
      %588 = dma.vmem_to_hbm [thread:$0]  %s586, 32, %s6, [#allocation4]
    $region37: #{tpu_custom_call.1} parent=1 // pred_fallthru
      _
    // Predicated region
    $region38: #{tpu_custom_call.1} parent=1 // pred_check
      _
    $region39: #{tpu_custom_call.1} parent=1 // pred_check_branch
      %590 = sbr.rel (0) target = $region41
    $region40: #{tpu_custom_call.1} parent=1 // pred_region
      %591 = dma.done [#allocation4], 32
    $region41: #{tpu_custom_call.1} parent=1 // pred_fallthru
      _
    %592 = vsyncpa [#allocation3], 1
    %593 = vsyncpa [#allocation6], 1
    %594 = vsyncpa [#allocation4], 1

</llo_original>
